<compile_context>
chip_gen: v7x
topology: tpu7x:2x2x1
jax: 0.10.0
libtpu: 0.0.40
codegen_flags: <defaults>
</compile_context>

<pallas_src>
import functools

import jax
import jax.numpy as jnp
from jax.experimental import pallas as pl
from jax.experimental.pallas import tpu as pltpu


def _round_up(x, m):
    return ((x + m - 1) // m) * m


def _physical_vmem_bytes():
    try:
        info = pltpu.get_tpu_info()
        v = int(getattr(info, "vmem_capacity_bytes", 0))
        if v > 0:
            return v
    except Exception:
        pass
    return 64 << 20  # conservative default: v7x per-TensorCore VMEM


def ffn_ln_kernel(x_ref, w1_ref, b1_ref, w2_ref, b2_ref, gamma_ref, beta_ref,
                  o_ref, acc_ref, *scratch, d_in, d_in_p, compute_dtype):
    """One (row-tile i, hidden K-tile k) step of LayerNorm(w2(relu(w1 x)) + x)."""
    k = pl.program_id(1)
    xc_ref = scratch[0] if scratch else None   # compute-dtype x cache (multi-K only)

    @pl.when(k == 0)
    def _():
        # Fold the residual and the w2 bias straight into the f32 accumulator:
        # saves a full-tile zero store and a full-tile add in the epilogue.
        acc_ref[...] = x_ref[...].astype(jnp.float32) + b2_ref[...]
        if xc_ref is not None:
            # Cast x to the MXU compute dtype once per row tile, not per K step.
            xc_ref[...] = x_ref[...].astype(compute_dtype)

    xc = xc_ref[...] if xc_ref is not None else x_ref[...].astype(compute_dtype)
    h = jnp.dot(xc, w1_ref[...], preferred_element_type=jnp.float32)      # (tm, tk)
    h = jnp.maximum(h + b1_ref[...], 0.0)
    acc_ref[...] += jnp.dot(h.astype(compute_dtype), w2_ref[...],
                            preferred_element_type=jnp.float32)           # (tm, d_in_p)

    @pl.when(k == pl.num_programs(1) - 1)
    def _():
        y = acc_ref[...]                                  # already residual + b2
        inv_n = jnp.float32(1.0 / d_in)
        mean = jnp.sum(y, axis=-1, keepdims=True) * inv_n
        if d_in == d_in_p:
            diff = y - mean
        else:
            # Padded y columns are exactly zero, but (y - mean) is not; mask them
            # for the variance. Skipped statically when d_in is 128-aligned.
            col = jax.lax.broadcasted_iota(jnp.int32, y.shape, 1)
            diff = jnp.where(col < d_in, y - mean, 0.0)
        var = jnp.sum(diff * diff, axis=-1, keepdims=True) * inv_n
        normed = diff * jax.lax.rsqrt(var + jnp.float32(1e-6))
        o_ref[...] = (normed * gamma_ref[...] + beta_ref[...]).astype(o_ref.dtype)


def make_feed_forward(w1, b1, w2, b2, gamma, beta, *, tm=None, tk=None,
                      compute_dtype=jnp.bfloat16, force_k_tiling=False):
    """Pads / casts the parameters ONCE (hoisted out of the per-call hot path) and
    returns apply(x) computing LayerNorm(w2(relu(w1 x + b1)) + b2 + x), eps=1e-6.

    w1: (d_in, d_hid), w2: (d_hid, d_in) (x @ W convention)."""
    d_in, d_hid = w1.shape
    assert w2.shape == (d_hid, d_in)
    wbytes = jnp.dtype(compute_dtype).itemsize

    d_in_p = _round_up(d_in, 128)
    d_hid_128 = _round_up(d_hid, 128)

    phys_vmem = _physical_vmem_bytes()
    # Leave ~25% headroom for Mosaic internal scratch / semaphores:
    # ≈48 MiB on v7x (64 MiB/TC), ≈96 MiB on v5e/v6e (128 MiB).
    budget = (phys_vmem * 3) // 4

    # Row tile: generation-aware default, large enough to amortize weight traffic.
    if tm is None:
        tm = 1024 if phys_vmem >= (96 << 20) else 512
    tm = max(8, tm - tm % 8)

    def per_tile_bytes(tm_, tk_, d_hid_pad_):
        return (2 * tm_ * d_in_p * 4                 # x tile (f32), double-buffered
                + 2 * tm_ * d_in_p * 4               # out tile, double-buffered
                + tm_ * d_in_p * 4                   # f32 accumulator scratch
                + tm_ * d_in_p * wbytes              # compute-dtype x cache scratch
                + 2 * 2 * d_in_p * tk_ * wbytes      # w1 + w2 tiles, double-buffered
                + 8 * (d_hid_pad_ + 3 * d_in_p) * 4)  # bias / LN vectors (generous)

    # Prefer keeping the whole bf16 w1/w2 resident in VMEM: with a constant
    # weight block index the weights are DMA'd from HBM once for the whole call.
    resident = (not force_k_tiling) and per_tile_bytes(tm, d_hid_128, d_hid_128) <= budget
    if resident:
        tk = d_hid_pad = d_hid_128
    else:
        # Stream (d_in_p, tk)/(tk, d_in_p) weight K-tiles. tk is a multiple of 256
        # (full MXU width on v6e/v7x); pad d_hid up to a multiple of tk (zero
        # padding stays exact) rather than gcd-collapsing tk down to 128.
        if tk is None:
            tk = 512
        tk = max(256, (tk // 256) * 256)
        d_hid_pad = _round_up(d_hid, 256)
        tk = min(tk, d_hid_pad)
        while d_hid_pad % tk:
            tk -= 256
        while per_tile_bytes(tm, tk, d_hid_pad) > budget and tm > 256:
            tm = max(256, ((tm // 2) // 8) * 8)

    # One-time parameter padding / casting (kept alive across apply() calls).
    w1p = jnp.pad(w1, ((0, d_in_p - d_in), (0, d_hid_pad - d_hid))).astype(compute_dtype)
    w2p = jnp.pad(w2, ((0, d_hid_pad - d_hid), (0, d_in_p - d_in))).astype(compute_dtype)
    b1p = jnp.pad(b1, (0, d_hid_pad - d_hid)).astype(jnp.float32).reshape(1, d_hid_pad)
    b2p = jnp.pad(b2, (0, d_in_p - d_in)).astype(jnp.float32).reshape(1, d_in_p)
    gp = jnp.pad(gamma, (0, d_in_p - d_in)).astype(jnp.float32).reshape(1, d_in_p)
    bp = jnp.pad(beta, (0, d_in_p - d_in)).astype(jnp.float32).reshape(1, d_in_p)

    n_k = d_hid_pad // tk
    tm_cfg = tm
    kernel = functools.partial(ffn_ln_kernel, d_in=d_in, d_in_p=d_in_p,
                               compute_dtype=compute_dtype)

    def apply(x):
        B, S, d = x.shape
        assert d == d_in
        M = B * S

        tm_c = min(tm_cfg, _round_up(M, 8))
        M_p = _round_up(M, tm_c)
        # Megacore (v7x): if weights are resident (extra row tiles add no weight
        # traffic) but M fits one tile, split in two so the "parallel" row axis
        # can shard across both TensorCores.
        if resident and M_p // tm_c == 1 and M >= 512:
            tm_c = _round_up((M + 1) // 2, 8)
            M_p = _round_up(M, tm_c)

        # Zero-pad the activations; math over the padded region is exact.
        x2 = jnp.pad(x.reshape(M, d_in), ((0, M_p - M), (0, d_in_p - d_in)))

        grid = (M_p // tm_c, n_k)

        scratch = [pltpu.VMEM((tm_c, d_in_p), jnp.float32)]           # f32 accumulator
        if n_k > 1:
            scratch.append(pltpu.VMEM((tm_c, d_in_p), compute_dtype))  # x cache

        vmem_est = per_tile_bytes(tm_c, tk, d_hid_pad)
        vmem_limit = int(min(budget, max(32 << 20, int(1.5 * vmem_est))))

        cost = pl.CostEstimate(
            flops=4 * M_p * d_in_p * d_hid_pad,                     # two matmuls
            transcendentals=M_p,                                    # rsqrt per row
            bytes_accessed=(2 * M_p * d_in_p * 4
                            + 2 * d_in_p * d_hid_pad * wbytes
                            * (1 if n_k == 1 else (M_p // tm_c))),
        )

        out = pl.pallas_call(
            kernel,
            out_shape=jax.ShapeDtypeStruct((M_p, d_in_p), x.dtype),
            grid_spec=pltpu.PrefetchScalarGridSpec(
                num_scalar_prefetch=0,
                grid=grid,
                in_specs=[
                    pl.BlockSpec((tm_c, d_in_p), lambda i, k: (i, 0)),  # x rows
                    pl.BlockSpec((d_in_p, tk), lambda i, k: (0, k)),    # w1 (K-tile)
                    pl.BlockSpec((1, tk), lambda i, k: (0, k)),         # b1 (K-tile)
                    pl.BlockSpec((tk, d_in_p), lambda i, k: (k, 0)),    # w2 (K-tile)
                    pl.BlockSpec((1, d_in_p), lambda i, k: (0, 0)),     # b2
                    pl.BlockSpec((1, d_in_p), lambda i, k: (0, 0)),     # gamma
                    pl.BlockSpec((1, d_in_p), lambda i, k: (0, 0)),     # beta
                ],
                out_specs=pl.BlockSpec((tm_c, d_in_p), lambda i, k: (i, 0)),
                scratch_shapes=scratch,
            ),
            compiler_params=pltpu.CompilerParams(
                dimension_semantics=("parallel", "arbitrary"),
                vmem_limit_bytes=vmem_limit),
            cost_estimate=cost,
        )(x2, w1p, b1p, w2p, b2p, gp, bp)

        return out[:M, :d_in].reshape(B, S, d_in)

    return apply


def feed_forward(x, w1, b1, w2, b2, gamma, beta, **kwargs):
    """One-shot convenience wrapper (params are padded/cast on every call; prefer
    make_feed_forward(...) when calling repeatedly)."""
    return make_feed_forward(w1, b1, w2, b2, gamma, beta, **kwargs)(x)


def _reference_f32(x, w1, b1, w2, b2, gamma, beta):
    h = jnp.maximum(x @ w1 + b1, 0.0)
    y = h @ w2 + b2 + x
    mean = jnp.mean(y, axis=-1, keepdims=True)
    var = jnp.mean((y - mean) ** 2, axis=-1, keepdims=True)
    return (y - mean) * jax.lax.rsqrt(var + 1e-6) * gamma + beta


def _reference_matched(x, w1, b1, w2, b2, gamma, beta, compute_dtype):
    # Same precision recipe as the kernel: bf16 matmul operands, f32 accumulate/LN.
    xd = x.astype(compute_dtype)
    h = jnp.dot(xd, w1.astype(compute_dtype), preferred_element_type=jnp.float32) + b1
    h = jnp.maximum(h, 0.0)
    y = jnp.dot(h.astype(compute_dtype), w2.astype(compute_dtype),
                preferred_element_type=jnp.float32) + b2 + x
    mean = jnp.mean(y, axis=-1, keepdims=True)
    var = jnp.mean((y - mean) ** 2, axis=-1, keepdims=True)
    return (y - mean) * jax.lax.rsqrt(var + 1e-6) * gamma + beta


if __name__ == "__main__":
    key = jax.random.PRNGKey(0)

    def make_params(k, d_in, d_hid):
        k1, k2, k3, k4 = jax.random.split(k, 4)
        w1 = jax.random.normal(k1, (d_in, d_hid), dtype=jnp.float32) * 0.1
        b1 = jax.random.normal(k2, (d_hid,), dtype=jnp.float32) * 0.1
        w2 = jax.random.normal(k3, (d_hid, d_in), dtype=jnp.float32) * 0.1
        b2 = jax.random.normal(k4, (d_in,), dtype=jnp.float32) * 0.1
        gamma = jnp.ones((d_in,), dtype=jnp.float32)
        beta = jnp.zeros((d_in,), dtype=jnp.float32)
        return w1, b1, w2, b2, gamma, beta

    def check(out, x, params):
        ref_m = _reference_matched(x, *params, compute_dtype=jnp.bfloat16)
        ref_f = _reference_f32(x, *params)
        assert jnp.allclose(out, ref_m, atol=2e-3, rtol=2e-3), \
            float(jnp.max(jnp.abs(out - ref_m)))
        assert jnp.allclose(out, ref_f, atol=5e-2, rtol=5e-2), \
            float(jnp.max(jnp.abs(out - ref_f)))

    # Test 1: module-spec toy shapes (d_in=32, d_hid=64), B=2, S=8. Weights
    # resident; params padded/cast once, apply() reused across calls.
    B, S, d_in, d_hid = 2, 8, 32, 64
    kx, kx_b, kp, key = jax.random.split(key, 4)
    x = jax.random.normal(kx, (B, S, d_in), dtype=jnp.float32)
    params = make_params(kp, d_in, d_hid)
    ffn = make_feed_forward(*params)
    out = ffn(x)
    jax.block_until_ready(out)
    assert out.shape == (B, S, d_in)
    check(out, x, params)
    xb = jax.random.normal(kx_b, (B, S, d_in), dtype=jnp.float32)
    out_b = ffn(xb)                     # reuse of the one-time-prepared params
    jax.block_until_ready(out_b)
    check(out_b, xb, params)

    # Test 2: ragged row count (M=20), d_in already 128-aligned (mask-free
    # epilogue path), weights resident in one K step.
    B2, S2, d_in2, d_hid2 = 2, 10, 128, 384
    kx2, kp2, key = jax.random.split(key, 3)
    x2 = jax.random.normal(kx2, (B2, S2, d_in2), dtype=jnp.float32)
    params2 = make_params(kp2, d_in2, d_hid2)
    out2 = feed_forward(x2, *params2)
    jax.block_until_ready(out2)
    assert out2.shape == (B2, S2, d_in2)
    check(out2, x2, params2)

    # Test 3: force the K-tiled streaming path (tk=256, d_hid=640 padded to 768,
    # 3 K steps) with the bf16 x-cache scratch and residual-initialized acc.
    B3, S3, d_in3, d_hid3 = 2, 64, 128, 640
    kx3, kp3, key = jax.random.split(key, 3)
    x3 = jax.random.normal(kx3, (B3, S3, d_in3), dtype=jnp.float32)
    params3 = make_params(kp3, d_in3, d_hid3)
    out3 = feed_forward(x3, *params3, tk=256, force_k_tiling=True)
    jax.block_until_ready(out3)
    assert out3.shape == (B3, S3, d_in3)
    check(out3, x3, params3)

    print("KERNEL_OK")
</pallas_src>

<mosaic_0001>
module attributes {stable_mosaic.version = 11 : i64} {
  func.func @ffn_ln_kernel(%arg0: i32, %arg1: i32, %arg2: memref<16x128xf32, #tpu.memory_space<vmem>>, %arg3: memref<128x128xbf16, #tpu.memory_space<vmem>>, %arg4: memref<1x128xf32, #tpu.memory_space<vmem>>, %arg5: memref<128x128xbf16, #tpu.memory_space<vmem>>, %arg6: memref<1x128xf32, #tpu.memory_space<vmem>>, %arg7: memref<1x128xf32, #tpu.memory_space<vmem>>, %arg8: memref<1x128xf32, #tpu.memory_space<vmem>>, %arg9: memref<16x128xf32, #tpu.memory_space<vmem>>, %arg10: memref<16x128xf32, #tpu.memory_space<vmem>>) attributes {dimension_semantics = [#tpu.dimension_semantics<parallel>, #tpu.dimension_semantics<arbitrary>], iteration_bounds = array<i64: 1, 1>, scalar_prefetch = 0 : i64, scratch_operands = 1 : i64, tpu.core_type = #tpu.core_type<tc>, window_params = [{transform_indices = @transform_0, window_bounds = array<i64: 16, 128>}, {transform_indices = @transform_1, window_bounds = array<i64: 128, 128>}, {transform_indices = @transform_2, window_bounds = array<i64: 1, 128>}, {transform_indices = @transform_3, window_bounds = array<i64: 128, 128>}, {pipeline_mode = #tpu.pipeline_mode<synchronous>, transform_indices = @transform_4, window_bounds = array<i64: 1, 128>}, {pipeline_mode = #tpu.pipeline_mode<synchronous>, transform_indices = @transform_5, window_bounds = array<i64: 1, 128>}, {pipeline_mode = #tpu.pipeline_mode<synchronous>, transform_indices = @transform_6, window_bounds = array<i64: 1, 128>}, {transform_indices = @transform_7, window_bounds = array<i64: 16, 128>}]} {
    %c0_i32 = arith.constant 0 : i32
    %0 = arith.cmpi eq, %arg1, %c0_i32 : i32
    %1 = arith.extui %0 : i1 to i32
    %c0_i32_0 = arith.constant 0 : i32
    %2 = arith.cmpi ne, %1, %c0_i32_0 : i32
    scf.if %2 {
      %c0_16 = arith.constant 0 : index
      %c0_17 = arith.constant 0 : index
      %21 = vector.load %arg2[%c0_16, %c0_17] : memref<16x128xf32, #tpu.memory_space<vmem>>, vector<16x128xf32>
      %c0_18 = arith.constant 0 : index
      %c0_19 = arith.constant 0 : index
      %22 = vector.load %arg6[%c0_18, %c0_19] : memref<1x128xf32, #tpu.memory_space<vmem>>, vector<1x128xf32>
      %23 = vector.broadcast %22 : vector<1x128xf32> to vector<16x128xf32>
      %24 = arith.addf %21, %23 : vector<16x128xf32>
      %c0_20 = arith.constant 0 : index
      %c0_21 = arith.constant 0 : index
      %25 = vector.load %arg10[%c0_20, %c0_21] : memref<16x128xf32, #tpu.memory_space<vmem>>, vector<16x128xf32>
      tpu.vector_store %arg10[%c0_20, %c0_21], %24 {strides = array<i32>} : memref<16x128xf32, #tpu.memory_space<vmem>>, vector<16x128xf32>,
    } else {
    }
    %c0 = arith.constant 0 : index
    %c0_1 = arith.constant 0 : index
    %3 = vector.load %arg2[%c0, %c0_1] : memref<16x128xf32, #tpu.memory_space<vmem>>, vector<16x128xf32>
    %4 = arith.truncf %3 : vector<16x128xf32> to vector<16x128xbf16>
    %c0_2 = arith.constant 0 : index
    %c0_3 = arith.constant 0 : index
    %5 = vector.load %arg3[%c0_2, %c0_3] : memref<128x128xbf16, #tpu.memory_space<vmem>>, vector<128x128xbf16>
    %cst = arith.constant dense<0.000000e+00> : vector<16x128xf32>
    %6 = tpu.matmul %4, %5, %cst {dimension_numbers = #tpu.dot_dimension_numbers<[1], [0], [0], [1], [0, 0, 1, 1], [], []>} : vector<16x128xbf16>, vector<128x128xbf16>, vector<16x128xf32> -> vector<16x128xf32>
    %c0_4 = arith.constant 0 : index
    %c0_5 = arith.constant 0 : index
    %7 = vector.load %arg4[%c0_4, %c0_5] : memref<1x128xf32, #tpu.memory_space<vmem>>, vector<1x128xf32>
    %8 = vector.broadcast %7 : vector<1x128xf32> to vector<16x128xf32>
    %9 = arith.addf %6, %8 : vector<16x128xf32>
    %cst_6 = arith.constant 0.000000e+00 : f32
    %10 = vector.broadcast %cst_6 : f32 to vector<16x128xf32>
    %11 = arith.maximumf %9, %10 : vector<16x128xf32>
    %c0_7 = arith.constant 0 : index
    %c0_8 = arith.constant 0 : index
    %12 = vector.load %arg10[%c0_7, %c0_8] : memref<16x128xf32, #tpu.memory_space<vmem>>, vector<16x128xf32>
    %13 = arith.truncf %11 : vector<16x128xf32> to vector<16x128xbf16>
    %c0_9 = arith.constant 0 : index
    %c0_10 = arith.constant 0 : index
    %14 = vector.load %arg5[%c0_9, %c0_10] : memref<128x128xbf16, #tpu.memory_space<vmem>>, vector<128x128xbf16>
    %cst_11 = arith.constant dense<0.000000e+00> : vector<16x128xf32>
    %15 = tpu.matmul %13, %14, %cst_11 {dimension_numbers = #tpu.dot_dimension_numbers<[1], [0], [0], [1], [0, 0, 1, 1], [], []>} : vector<16x128xbf16>, vector<128x128xbf16>, vector<16x128xf32> -> vector<16x128xf32>
    %16 = arith.addf %12, %15 : vector<16x128xf32>
    %c0_12 = arith.constant 0 : index
    %c0_13 = arith.constant 0 : index
    %17 = vector.load %arg10[%c0_12, %c0_13] : memref<16x128xf32, #tpu.memory_space<vmem>>, vector<16x128xf32>
    tpu.vector_store %arg10[%c0_12, %c0_13], %16 {strides = array<i32>} : memref<16x128xf32, #tpu.memory_space<vmem>>, vector<16x128xf32>,
    %c0_i32_14 = arith.constant 0 : i32
    %18 = arith.cmpi eq, %arg1, %c0_i32_14 : i32
    %19 = arith.extui %18 : i1 to i32
    %c0_i32_15 = arith.constant 0 : i32
    %20 = arith.cmpi ne, %19, %c0_i32_15 : i32
    scf.if %20 {
      %c0_16 = arith.constant 0 : index
      %c0_17 = arith.constant 0 : index
      %21 = vector.load %arg10[%c0_16, %c0_17] : memref<16x128xf32, #tpu.memory_space<vmem>>, vector<16x128xf32>
      %cst_18 = arith.constant dense<0.000000e+00> : vector<16xf32>
      %22 = vector.multi_reduction <add>, %21, %cst_18 [1] : vector<16x128xf32> to vector<16xf32>
      %23 = vector.shape_cast %22 : vector<16xf32> to vector<16x1xf32>
      %cst_19 = arith.constant 3.125000e-02 : f32
      %24 = vector.broadcast %cst_19 : f32 to vector<16x1xf32>
      %25 = arith.mulf %23, %24 : vector<16x1xf32>
      %26 = tpu.iota {dimensions = array<i32: 1>} : vector<16x128xi32>
      %c32_i32 = arith.constant 32 : i32
      %27 = vector.broadcast %c32_i32 : i32 to vector<16x128xi32>
      %28 = arith.cmpi slt, %26, %27 : vector<16x128xi32>
      %29 = vector.broadcast %25 : vector<16x1xf32> to vector<16x128xf32>
      %30 = arith.subf %21, %29 : vector<16x128xf32>
      %cst_20 = arith.constant 0.000000e+00 : f32
      %31 = vector.broadcast %cst_20 : f32 to vector<16x128xf32>
      %32 = arith.select %28, %30, %31 : vector<16x128xi1>, vector<16x128xf32>
      %33 = arith.mulf %32, %32 : vector<16x128xf32>
      %cst_21 = arith.constant dense<0.000000e+00> : vector<16xf32>
      %34 = vector.multi_reduction <add>, %33, %cst_21 [1] : vector<16x128xf32> to vector<16xf32>
      %35 = vector.shape_cast %34 : vector<16xf32> to vector<16x1xf32>
      %cst_22 = arith.constant 3.125000e-02 : f32
      %36 = vector.broadcast %cst_22 : f32 to vector<16x1xf32>
      %37 = arith.mulf %35, %36 : vector<16x1xf32>
      %cst_23 = arith.constant 9.99999997E-7 : f32
      %38 = vector.broadcast %cst_23 : f32 to vector<16x1xf32>
      %39 = arith.addf %37, %38 : vector<16x1xf32>
      %40 = math.rsqrt %39 : vector<16x1xf32>
      %41 = vector.broadcast %40 : vector<16x1xf32> to vector<16x128xf32>
      %42 = arith.mulf %32, %41 : vector<16x128xf32>
      %c0_24 = arith.constant 0 : index
      %c0_25 = arith.constant 0 : index
      %43 = vector.load %arg7[%c0_24, %c0_25] : memref<1x128xf32, #tpu.memory_space<vmem>>, vector<1x128xf32>
      %44 = vector.broadcast %43 : vector<1x128xf32> to vector<16x128xf32>
      %45 = arith.mulf %42, %44 : vector<16x128xf32>
      %c0_26 = arith.constant 0 : index
      %c0_27 = arith.constant 0 : index
      %46 = vector.load %arg8[%c0_26, %c0_27] : memref<1x128xf32, #tpu.memory_space<vmem>>, vector<1x128xf32>
      %47 = vector.broadcast %46 : vector<1x128xf32> to vector<16x128xf32>
      %48 = arith.addf %45, %47 : vector<16x128xf32>
      %c0_28 = arith.constant 0 : index
      %c0_29 = arith.constant 0 : index
      %49 = vector.load %arg9[%c0_28, %c0_29] : memref<16x128xf32, #tpu.memory_space<vmem>>, vector<16x128xf32>
      tpu.vector_store %arg9[%c0_28, %c0_29], %48 {strides = array<i32>} : memref<16x128xf32, #tpu.memory_space<vmem>>, vector<16x128xf32>,
    } else {
    }
    return
  }
  func.func @transform_0(%arg0: i32, %arg1: i32) -> (i32, i32) {
    %c0_i32 = arith.constant 0 : i32
    %c0_i32_0 = arith.constant 0 : i32
    return %arg0, %c0_i32 : i32, i32
  }
  func.func @transform_1(%arg0: i32, %arg1: i32) -> (i32, i32) {
    %c0_i32 = arith.constant 0 : i32
    %c0_i32_0 = arith.constant 0 : i32
    return %c0_i32, %arg1 : i32, i32
  }
  func.func @transform_2(%arg0: i32, %arg1: i32) -> (i32, i32) {
    %c0_i32 = arith.constant 0 : i32
    %c0_i32_0 = arith.constant 0 : i32
    return %c0_i32, %arg1 : i32, i32
  }
  func.func @transform_3(%arg0: i32, %arg1: i32) -> (i32, i32) {
    %c0_i32 = arith.constant 0 : i32
    %c0_i32_0 = arith.constant 0 : i32
    return %arg1, %c0_i32 : i32, i32
  }
  func.func @transform_4(%arg0: i32, %arg1: i32) -> (i32, i32) {
    %c0_i32 = arith.constant 0 : i32
    %c0_i32_0 = arith.constant 0 : i32
    %c0_i32_1 = arith.constant 0 : i32
    return %c0_i32, %c0_i32_0 : i32, i32
  }
  func.func @transform_5(%arg0: i32, %arg1: i32) -> (i32, i32) {
    %c0_i32 = arith.constant 0 : i32
    %c0_i32_0 = arith.constant 0 : i32
    %c0_i32_1 = arith.constant 0 : i32
    return %c0_i32, %c0_i32_0 : i32, i32
  }
  func.func @transform_6(%arg0: i32, %arg1: i32) -> (i32, i32) {
    %c0_i32 = arith.constant 0 : i32
    %c0_i32_0 = arith.constant 0 : i32
    %c0_i32_1 = arith.constant 0 : i32
    return %c0_i32, %c0_i32_0 : i32, i32
  }
  func.func @transform_7(%arg0: i32, %arg1: i32) -> (i32, i32) {
    %c0_i32 = arith.constant 0 : i32
    %c0_i32_0 = arith.constant 0 : i32
    return %arg0, %c0_i32 : i32, i32
  }
}

</mosaic_0001>

<llo_original>
// kernel: tpu_custom_call.1
$region0: #{tpu_custom_call.1}
  #allocation0 [shape = 'u32[]', space=smem, size = 0x4, offset = 0x4, fixed_abs, tag = 'smem constant byte address 0x4 - core index']
  #allocation1 [shape = 'u32[144,128]{1,0:T(1,128)}', space=vmem, size = 0x12000, scoped, tag = 'internal scratch']
  #allocation2 [shape = 'f32[16,128]{1,0:T(8,128)}', space=vmem, size = 0x2000, scoped, tag = 'scratch operand']
  %s0 = inlined_call_operand.hbm [shape: f32[16,128], index: 0, kind: input, shape index: {}]
  %s1 = inlined_call_operand.hbm [shape: bf16[128,128], index: 1, kind: input, shape index: {}]
  %s2 = inlined_call_operand.vmem [shape: f32[1,128], index: 2, kind: input, shape index: {}]
  %s3 = inlined_call_operand.hbm [shape: bf16[128,128], index: 3, kind: input, shape index: {}]
  %s4 = inlined_call_operand.vmem [shape: f32[1,128], index: 4, kind: input, shape index: {}]
  %s5 = inlined_call_operand.vmem [shape: f32[1,128], index: 5, kind: input, shape index: {}]
  %s6 = inlined_call_operand.vmem [shape: f32[1,128], index: 6, kind: input, shape index: {}]
  %s7 = inlined_call_operand.hbm [shape: f32[16,128], index: 7, kind: output, shape index: {}]
  %s8 = sld [smem:[#allocation0]]
  $region58: #{tpu_custom_call.1} parent=0
    _
  %s10 = ssub.s32 1, %s8
  %s11 = scalar_select 0, %s10, %s8
  $region1: #{tpu_custom_call.1} parent=0
    #allocation3 [shape = 'u8[8192]{0}', space=vmem, size = 0x2000, scoped, tag = 'input window, operand 0, single buffered']
    #allocation4 [shape = 's32[1]{0}', space=sflag, size = 0x4, scoped, tag = 'scoped memory for tpu_custom_call.1']
    #allocation5 [shape = 's32[1]{0}', space=sflag, size = 0x4, scoped, tag = 'scoped memory for tpu_custom_call.1']
    #allocation6 [shape = 'u8[32768]{0}', space=vmem, size = 0x8000, scoped, tag = 'input window, operand 1, single buffered']
    #allocation7 [shape = 's32[1]{0}', space=sflag, size = 0x4, scoped, tag = 'scoped memory for tpu_custom_call.1']
    #allocation8 [shape = 'u8[32768]{0}', space=vmem, size = 0x8000, scoped, tag = 'input window, operand 3, single buffered']
    #allocation9 [shape = 'u8[8192]{0}', space=vmem, size = 0x2000, scoped, tag = 'output window, operand 0, single buffered']
    %12 = vsyncpa [#allocation4], 0
    %13 = vsyncpa [#allocation7], 0
    %14 = vsyncpa [#allocation5], 0
    // Predicated region
    $region2: #{tpu_custom_call.1} parent=1 // pred_check
      _
    $region3: #{tpu_custom_call.1} parent=1 // pred_check_branch
      %16 = sbr.rel (0) target = $region5
    $region4: #{tpu_custom_call.1} parent=1 // pred_region
      %s18 = ssub.s32 256, 256
      %19 = vsyncadd [#allocation4], %s18
      %s20 = sshll.u32 [#allocation3], 4
      %s21 = int_to_ptr.vmem [resolvable:$true] %s20
      %26 = dma.hbm_to_vmem [thread:$0]  %s0, 256, %s21, [#allocation4], 128, 128, 8
    $region5: #{tpu_custom_call.1} parent=1 // pred_fallthru
      _
    // Predicated region
    $region6: #{tpu_custom_call.1} parent=1 // pred_check
      _
    $region7: #{tpu_custom_call.1} parent=1 // pred_check_branch
      %28 = sbr.rel (0) target = $region9
    $region8: #{tpu_custom_call.1} parent=1 // pred_region
      %s30 = ssub.s32 1024, 1024
      %31 = vsyncadd [#allocation7], %s30
      %s32 = sshll.u32 [#allocation6], 4
      %s33 = int_to_ptr.vmem [resolvable:$true] %s32
      %38 = dma.hbm_to_vmem [thread:$0]  %s1, 1024, %s33, [#allocation7], 64, 64, 4
    $region9: #{tpu_custom_call.1} parent=1 // pred_fallthru
      _
    // Predicated region
    $region10: #{tpu_custom_call.1} parent=1 // pred_check
      _
    $region11: #{tpu_custom_call.1} parent=1 // pred_check_branch
      %40 = sbr.rel (0) target = $region13
    $region12: #{tpu_custom_call.1} parent=1 // pred_region
      _
    $region13: #{tpu_custom_call.1} parent=1 // pred_fallthru
      _
    // Predicated region
    $region14: #{tpu_custom_call.1} parent=1 // pred_check
      _
    $region15: #{tpu_custom_call.1} parent=1 // pred_check_branch
      %42 = sbr.rel (0) target = $region17
    $region16: #{tpu_custom_call.1} parent=1 // pred_region
      %s44 = ssub.s32 1024, 1024
      %45 = vsyncadd [#allocation7], %s44
      %s46 = sshll.u32 [#allocation8], 4
      %s47 = int_to_ptr.vmem [resolvable:$true] %s46
      %52 = dma.hbm_to_vmem [thread:$0]  %s3, 1024, %s47, [#allocation7], 64, 64, 4
    $region17: #{tpu_custom_call.1} parent=1 // pred_fallthru
      _
    // Predicated region
    $region18: #{tpu_custom_call.1} parent=1 // pred_check
      _
    $region19: #{tpu_custom_call.1} parent=1 // pred_check_branch
      %54 = sbr.rel (0) target = $region21
    $region20: #{tpu_custom_call.1} parent=1 // pred_region
      _
    $region21: #{tpu_custom_call.1} parent=1 // pred_fallthru
      _
    // Predicated region
    $region22: #{tpu_custom_call.1} parent=1 // pred_check
      _
    $region23: #{tpu_custom_call.1} parent=1 // pred_check_branch
      %56 = sbr.rel (0) target = $region25
    $region24: #{tpu_custom_call.1} parent=1 // pred_region
      _
    $region25: #{tpu_custom_call.1} parent=1 // pred_fallthru
      _
    // Predicated region
    $region26: #{tpu_custom_call.1} parent=1 // pred_check
      _
    $region27: #{tpu_custom_call.1} parent=1 // pred_check_branch
      %58 = sbr.rel (0) target = $region29
    $region28: #{tpu_custom_call.1} parent=1 // pred_region
      _
    $region29: #{tpu_custom_call.1} parent=1 // pred_fallthru
      _
    // Predicated region
    $region30: #{tpu_custom_call.1} parent=1 // pred_check
      _
    $region31: #{tpu_custom_call.1} parent=1 // pred_check_branch
      %60 = sbr.rel (0) target = $region33
    $region32: #{tpu_custom_call.1} parent=1 // pred_region
      %61 = dma.done [#allocation4], 256
    $region33: #{tpu_custom_call.1} parent=1 // pred_fallthru
      _
    // Predicated region
    $region34: #{tpu_custom_call.1} parent=1 // pred_check
      _
    $region35: #{tpu_custom_call.1} parent=1 // pred_check_branch
      %63 = sbr.rel (0) target = $region37
    $region36: #{tpu_custom_call.1} parent=1 // pred_region
      %64 = dma.done [#allocation7], 1024
    $region37: #{tpu_custom_call.1} parent=1 // pred_fallthru
      _
    // Predicated region
    $region38: #{tpu_custom_call.1} parent=1 // pred_check
      _
    $region39: #{tpu_custom_call.1} parent=1 // pred_check_branch
      %66 = sbr.rel (0) target = $region41
    $region40: #{tpu_custom_call.1} parent=1 // pred_region
      %67 = dma.done [#allocation7], 1024
    $region41: #{tpu_custom_call.1} parent=1 // pred_fallthru
      _
    %p69 = scmp.eq.s32.totalorder 0, 0
    // Predicated region
    $region42: #{tpu_custom_call.1} parent=1 // pred_check
      %p70 = pneg %p69
    $region43: #{tpu_custom_call.1} parent=1 // pred_check_branch
      %72 = sbr.rel (%p70) target = $region45
    $region44: #{tpu_custom_call.1} parent=1 // pred_region
      %v73 = vld [vmem:[#allocation3] sm:$0xff]
      %v74 = vld [vmem:[#allocation3 + $0x8] sm:$0xff]
      %v75 = vld [vmem:[%s4] sm:$0x1]
      %v77 = vlaneseq
      %v78 = vshrl.u32 %v77, 7
      %v79 = vsub.s32 0, %v78
      %v80 = vrot.slane %v75, %v79
      %v82 = vadd.f32 %v73, %v80
      %v83 = vadd.f32 %v74, %v80
      %84 = vst [vmem:[#allocation2] sm:$0xff] %v82
      %85 = vst [vmem:[#allocation2 + $0x8] sm:$0xff] %v83
    $region45: #{tpu_custom_call.1} parent=1 // pred_fallthru
      _
    %v86 = vld [vmem:[#allocation3] sm:$0xff]
    %v87 = vld [vmem:[#allocation3 + $0x8] sm:$0xff]
    %v88 = vpack.c.bf16 %v87, %v86
    %v89 = vld [vmem:[#allocation6] sm:$0xf]
    %v90 = vld [vmem:[#allocation6 + $0x4] sm:$0xf]
    %v91 = vld [vmem:[#allocation6 + $0x8] sm:$0xf]
    %v92 = vld [vmem:[#allocation6 + $0xc] sm:$0xf]
    %v93 = vld [vmem:[#allocation6 + $0x10] sm:$0xf]
    %v94 = vld [vmem:[#allocation6 + $0x14] sm:$0xf]
    %v95 = vld [vmem:[#allocation6 + $0x18] sm:$0xf]
    %v96 = vld [vmem:[#allocation6 + $0x1c] sm:$0xf]
    %v97 = vld [vmem:[#allocation6 + $0x20] sm:$0xf]
    %v98 = vld [vmem:[#allocation6 + $0x24] sm:$0xf]
    %v99 = vld [vmem:[#allocation6 + $0x28] sm:$0xf]
    %v100 = vld [vmem:[#allocation6 + $0x2c] sm:$0xf]
    %v101 = vld [vmem:[#allocation6 + $0x30] sm:$0xf]
    %v102 = vld [vmem:[#allocation6 + $0x34] sm:$0xf]
    %v103 = vld [vmem:[#allocation6 + $0x38] sm:$0xf]
    %v104 = vld [vmem:[#allocation6 + $0x3c] sm:$0xf]
    %v105 = vld [vmem:[%s2] sm:$0x1]
    %v107 = vlaneseq
    %v108 = vshrl.u32 %v107, 7
    %v109 = vsub.s32 0, %v108
    %v110 = vrot.slane %v105, %v109
    %v128 = vunpack.c.l.b16 %v89
    %v129 = vunpack.c.l.b16 %v90
    %v130 = vunpack.c.l.b16 %v91
    %v131 = vunpack.c.l.b16 %v92
    %v132 = vunpack.c.l.b16 %v93
    %v133 = vunpack.c.l.b16 %v94
    %v134 = vunpack.c.l.b16 %v95
    %v135 = vunpack.c.l.b16 %v96
    %v136 = vunpack.c.l.b16 %v97
    %v137 = vunpack.c.l.b16 %v98
    %v138 = vunpack.c.l.b16 %v99
    %v139 = vunpack.c.l.b16 %v100
    %v140 = vunpack.c.l.b16 %v101
    %v141 = vunpack.c.l.b16 %v102
    %v142 = vunpack.c.l.b16 %v103
    %v143 = vunpack.c.l.b16 %v104
    %v144 = vpack.c.b16 %v129, %v128
    %v145 = vpack.c.b16 %v131, %v130
    %v146 = vpack.c.b16 %v133, %v132
    %v147 = vpack.c.b16 %v135, %v134
    %v148 = vpack.c.b16 %v137, %v136
    %v149 = vpack.c.b16 %v139, %v138
    %v150 = vpack.c.b16 %v141, %v140
    %v151 = vpack.c.b16 %v143, %v142
    %160 = vmatprep.subr.bf16.mxu0 0
    %161 = vmatpush1.bf16.msra.mxu0 %v144
    %162 = vmatprep.subr.bf16.mxu0 0
    %163 = vmatpush1.bf16.msra.mxu0 %v145
    %164 = vmatprep.subr.bf16.mxu0 0
    %165 = vmatpush1.bf16.msra.mxu0 %v146
    %166 = vmatprep.subr.bf16.mxu0 0
    %167 = vmatpush1.bf16.msra.mxu0 %v147
    %168 = vmatprep.subr.bf16.mxu0 0
    %169 = vmatpush1.bf16.msra.mxu0 %v148
    %170 = vmatprep.subr.bf16.mxu0 0
    %171 = vmatpush1.bf16.msra.mxu0 %v149
    %172 = vmatprep.subr.bf16.mxu0 0
    %173 = vmatpush1.bf16.msra.mxu0 %v150
    %174 = vmatprep.subr.bf16.mxu0 0
    %175 = vmatpush1.bf16.msra.mxu0 %v151
    %176 = vmatprep.subr.bf16.mxu0 0
    %177 = vmatpush1.bf16.msra.mxu0 0
    %178 = vmatprep.subr.bf16.mxu0 0
    %179 = vmatpush1.bf16.msra.mxu0 0
    %180 = vmatprep.subr.bf16.mxu0 0
    %181 = vmatpush1.bf16.msra.mxu0 0
    %182 = vmatprep.subr.bf16.mxu0 0
    %183 = vmatpush1.bf16.msra.mxu0 0
    %184 = vmatprep.subr.bf16.mxu0 0
    %185 = vmatpush1.bf16.msra.mxu0 0
    %186 = vmatprep.subr.bf16.mxu0 0
    %187 = vmatpush1.bf16.msra.mxu0 0
    %188 = vmatprep.subr.bf16.mxu0 0
    %189 = vmatpush1.bf16.msra.mxu0 0
    %190 = vmatprep.subr.bf16.mxu0 0
    %191 = vmatpush1.bf16.msra.mxu0 0
    %192 = vmatprep.mubr.bf16.mxu0 0
    %193 = vmatmul.mubr.bf16.gmra.mrb[0].mxu0 %v88
    %v194 = vpop.f32.mrb[0].mxu0
    %v195 = vadd.f32 %v110, %v194
    %v196 = vpop.f32.mrb[0].mxu0
    %v197 = vpop.f32.mrb[0].mxu0
    %v198 = vadd.f32 %v110, %v197
    %v199 = vpop.f32.mrb[0].mxu0
    %200 = vdwg.mxu0
    %v201 = vmax.f32 %v195, 0.0
    %v202 = vmax.f32 %v198, 0.0
    %v203 = vld [vmem:[#allocation2] sm:$0xff]
    %v204 = vld [vmem:[#allocation2 + $0x8] sm:$0xff]
    %v205 = vpack.c.bf16 %v202, %v201
    %v206 = vld [vmem:[#allocation8] sm:$0xf]
    %v207 = vld [vmem:[#allocation8 + $0x4] sm:$0xf]
    %v208 = vld [vmem:[#allocation8 + $0x8] sm:$0xf]
    %v209 = vld [vmem:[#allocation8 + $0xc] sm:$0xf]
    %v210 = vld [vmem:[#allocation8 + $0x10] sm:$0xf]
    %v211 = vld [vmem:[#allocation8 + $0x14] sm:$0xf]
    %v212 = vld [vmem:[#allocation8 + $0x18] sm:$0xf]
    %v213 = vld [vmem:[#allocation8 + $0x1c] sm:$0xf]
    %v214 = vld [vmem:[#allocation8 + $0x20] sm:$0xf]
    %v215 = vld [vmem:[#allocation8 + $0x24] sm:$0xf]
    %v216 = vld [vmem:[#allocation8 + $0x28] sm:$0xf]
    %v217 = vld [vmem:[#allocation8 + $0x2c] sm:$0xf]
    %v218 = vld [vmem:[#allocation8 + $0x30] sm:$0xf]
    %v219 = vld [vmem:[#allocation8 + $0x34] sm:$0xf]
    %v220 = vld [vmem:[#allocation8 + $0x38] sm:$0xf]
    %v221 = vld [vmem:[#allocation8 + $0x3c] sm:$0xf]
    %v238 = vunpack.c.l.b16 %v206
    %v239 = vunpack.c.l.b16 %v207
    %v240 = vunpack.c.l.b16 %v208
    %v241 = vunpack.c.l.b16 %v209
    %v242 = vunpack.c.l.b16 %v210
    %v243 = vunpack.c.l.b16 %v211
    %v244 = vunpack.c.l.b16 %v212
    %v245 = vunpack.c.l.b16 %v213
    %v246 = vunpack.c.l.b16 %v214
    %v247 = vunpack.c.l.b16 %v215
    %v248 = vunpack.c.l.b16 %v216
    %v249 = vunpack.c.l.b16 %v217
    %v250 = vunpack.c.l.b16 %v218
    %v251 = vunpack.c.l.b16 %v219
    %v252 = vunpack.c.l.b16 %v220
    %v253 = vunpack.c.l.b16 %v221
    %v254 = vpack.c.b16 %v239, %v238
    %v255 = vpack.c.b16 %v241, %v240
    %v256 = vpack.c.b16 %v243, %v242
    %v257 = vpack.c.b16 %v245, %v244
    %v258 = vpack.c.b16 %v247, %v246
    %v259 = vpack.c.b16 %v249, %v248
    %v260 = vpack.c.b16 %v251, %v250
    %v261 = vpack.c.b16 %v253, %v252
    %270 = vmatprep.subr.bf16.mxu0 0
    %271 = vmatpush1.bf16.msra.mxu0 %v254
    %272 = vmatprep.subr.bf16.mxu0 0
    %273 = vmatpush1.bf16.msra.mxu0 %v255
    %274 = vmatprep.subr.bf16.mxu0 0
    %275 = vmatpush1.bf16.msra.mxu0 %v256
    %276 = vmatprep.subr.bf16.mxu0 0
    %277 = vmatpush1.bf16.msra.mxu0 %v257
    %278 = vmatprep.subr.bf16.mxu0 0
    %279 = vmatpush1.bf16.msra.mxu0 %v258
    %280 = vmatprep.subr.bf16.mxu0 0
    %281 = vmatpush1.bf16.msra.mxu0 %v259
    %282 = vmatprep.subr.bf16.mxu0 0
    %283 = vmatpush1.bf16.msra.mxu0 %v260
    %284 = vmatprep.subr.bf16.mxu0 0
    %285 = vmatpush1.bf16.msra.mxu0 %v261
    %286 = vmatprep.subr.bf16.mxu0 0
    %287 = vmatpush1.bf16.msra.mxu0 0
    %288 = vmatprep.subr.bf16.mxu0 0
    %289 = vmatpush1.bf16.msra.mxu0 0
    %290 = vmatprep.subr.bf16.mxu0 0
    %291 = vmatpush1.bf16.msra.mxu0 0
    %292 = vmatprep.subr.bf16.mxu0 0
    %293 = vmatpush1.bf16.msra.mxu0 0
    %294 = vmatprep.subr.bf16.mxu0 0
    %295 = vmatpush1.bf16.msra.mxu0 0
    %296 = vmatprep.subr.bf16.mxu0 0
    %297 = vmatpush1.bf16.msra.mxu0 0
    %298 = vmatprep.subr.bf16.mxu0 0
    %299 = vmatpush1.bf16.msra.mxu0 0
    %300 = vmatprep.subr.bf16.mxu0 0
    %301 = vmatpush1.bf16.msra.mxu0 0
    %302 = vmatprep.mubr.bf16.mxu0 0
    %303 = vmatmul.mubr.bf16.gmra.mrb[0].mxu0 %v205
    %v304 = vpop.f32.mrb[0].mxu0
    %v305 = vadd.f32 0.0, %v304
    %v306 = vpop.f32.mrb[0].mxu0
    %v307 = vpop.f32.mrb[0].mxu0
    %v308 = vadd.f32 0.0, %v307
    %v309 = vpop.f32.mrb[0].mxu0
    %310 = vdwg.mxu0
    %v311 = vadd.f32 %v203, %v305
    %v312 = vadd.f32 %v204, %v308
    %313 = vst [vmem:[#allocation2] sm:$0xff] %v311
    %314 = vst [vmem:[#allocation2 + $0x8] sm:$0xff] %v312
    // Predicated region
    $region46: #{tpu_custom_call.1} parent=1 // pred_check
      %p315 = pneg %p69
    $region47: #{tpu_custom_call.1} parent=1 // pred_check_branch
      %317 = sbr.rel (%p315) target = $region49
    $region48: #{tpu_custom_call.1} parent=1 // pred_region
      %v318 = vld [vmem:[#allocation2] sm:$0xff]
      %v319 = vld [vmem:[#allocation2 + $0x8] sm:$0xff]
      %320 = vadd.xlane.f32.xlu0 %v318
      %v321 = vpop.xlane.xlu0 %320
      %322 = vadd.xlane.f32.xlu0 %v319
      %v323 = vpop.xlane.xlu0 %322
      %v324 = vmul.f32 %v321, 0.03125
      %v325 = vmul.f32 %v323, 0.03125
      %v326 = vlaneseq
      %v327 = vand.u32 %v326, 127
      %vm328 = vcmp.lt.s32.totalorder %v327, 32
      %v329 = vsub.f32 %v318, %v324
      %v330 = vsub.f32 %v319, %v325
      %v331 = vsel %vm328, %v329, 0.0
      %v332 = vsel %vm328, %v330, 0.0
      %v333 = vmul.f32 %v331, %v331
      %v334 = vmul.f32 %v332, %v332
      %335 = vadd.xlane.f32.xlu0 %v333
      %v336 = vpop.xlane.xlu0 %335
      %337 = vadd.xlane.f32.xlu0 %v334
      %v338 = vpop.xlane.xlu0 %337
      %v339 = vmul.f32 %v336, 0.03125
      %v340 = vmul.f32 %v338, 0.03125
      %v341 = vadd.f32 %v339, 1e-06
      %v342 = vadd.f32 %v340, 1e-06
      %v343 = vrsqrt.pop %v341
      %v344 = vrsqrt.pop %v342
      %v345 = vmul.f32 %v331, %v343
      %v346 = vmul.f32 %v332, %v344
      %v347 = vld [vmem:[%s5] sm:$0x1]
      %v349 = vlaneseq
      %v350 = vshrl.u32 %v349, 7
      %v351 = vsub.s32 0, %v350
      %v352 = vrot.slane %v347, %v351
      %v354 = vmul.f32 %v345, %v352
      %v355 = vmul.f32 %v346, %v352
      %v356 = vld [vmem:[%s6] sm:$0x1]
      %v358 = vlaneseq
      %v359 = vshrl.u32 %v358, 7
      %v360 = vsub.s32 0, %v359
      %v361 = vrot.slane %v356, %v360
      %v363 = vadd.f32 %v354, %v361
      %v364 = vadd.f32 %v355, %v361
      %365 = vst [vmem:[#allocation9] sm:$0xff] %v363
      %366 = vst [vmem:[#allocation9 + $0x8] sm:$0xff] %v364
    $region49: #{tpu_custom_call.1} parent=1 // pred_fallthru
      _
    // Predicated region
    $region50: #{tpu_custom_call.1} parent=1 // pred_check
      _
    $region51: #{tpu_custom_call.1} parent=1 // pred_check_branch
      %368 = sbr.rel (0) target = $region53
    $region52: #{tpu_custom_call.1} parent=1 // pred_region
      %s370 = ssub.s32 256, 256
      %371 = vsyncadd [#allocation5], %s370
      %s372 = sshll.u32 [#allocation9], 4
      %s373 = int_to_ptr.vmem [resolvable:$true] %s372
      %378 = dma.vmem_to_hbm [thread:$0]  %s373, 256, %s7, [#allocation5], 128, 128, 8
    $region53: #{tpu_custom_call.1} parent=1 // pred_fallthru
      _
    // Predicated region
    $region54: #{tpu_custom_call.1} parent=1 // pred_check
      _
    $region55: #{tpu_custom_call.1} parent=1 // pred_check_branch
      %380 = sbr.rel (0) target = $region57
    $region56: #{tpu_custom_call.1} parent=1 // pred_region
      %381 = dma.done [#allocation5], 256
    $region57: #{tpu_custom_call.1} parent=1 // pred_fallthru
      _
    %382 = vsyncpa [#allocation4], 1
    %383 = vsyncpa [#allocation7], 1
    %384 = vsyncpa [#allocation5], 1

</llo_original>
